<compile_context>
chip_gen: v6e
topology: v6e:2x2x1
jax: 0.10.0
libtpu: 0.0.40
codegen_flags: <defaults>
</compile_context>

<pallas_src>
import functools

import jax
import jax.numpy as jnp
from jax import lax
from jax.experimental import pallas as pl
from jax.experimental.pallas import tpu as pltpu


# ---------------------------------------------------------------------------
# Fused conv-as-GEMM Pallas kernel
# ---------------------------------------------------------------------------
def _conv_gemm_kernel(*refs, pre_act, post_act, has_residual):
    """o = post_act(W @ pre_act(patches)) [+ residual]."""
    if has_residual:
        w_ref, p_ref, r_ref, o_ref = refs
    else:
        w_ref, p_ref, o_ref = refs
        r_ref = None

    p = p_ref[...]
    if pre_act == "leaky_relu":          # LeakyReLU(0.2); leaky_relu(0) == 0
        p = jnp.where(p >= 0, p, jnp.float32(0.2) * p)
    elif pre_act == "relu":              # ReLU; relu(0) == 0
        p = jnp.maximum(p, jnp.float32(0.0))

    y = jnp.dot(w_ref[...], p, preferred_element_type=jnp.float32)

    if post_act == "relu":
        y = jnp.maximum(y, jnp.float32(0.0))
    if has_residual:
        y = y + r_ref[...].astype(jnp.float32)

    o_ref[...] = y.astype(o_ref.dtype)


def _pick_lane_tile(m, k, co, n_res, itemsize=4, vmem_budget_bytes=8 << 20):
    """Largest multiple-of-128 lane tile that divides m and keeps the
    double-buffered (patches + out [+ residual]) blocks under the VMEM budget.
    Falls back to the full extent (always a legal block) if m is not 128-aligned."""
    if m % 128 != 0:
        return m
    bytes_per_col = (k + co * (1 + n_res)) * itemsize
    max_cols = max(128, (vmem_budget_bytes // (2 * bytes_per_col)) // 128 * 128)
    tile = 128
    for cand in range(256, min(m, max_cols) + 1, 128):
        if m % cand == 0:
            tile = cand
    # v7x has 2 TensorCores per chip: prefer >= 2 "parallel" grid steps.
    if tile == m and m >= 256 and (m // 2) % 128 == 0:
        tile = m // 2
    return tile


def conv_gemm(w_mat, patches, residual=None, *, pre_act=None, post_act=None):
    """Pallas call computing (CO, K) @ (K, M) with fused activations / residual."""
    co, k = w_mat.shape
    k2, m = patches.shape
    assert k == k2
    has_res = residual is not None

    tm = _pick_lane_tile(m, k, co, int(has_res))
    grid = (m // tm,)

    in_specs = [
        pl.BlockSpec((co, k), lambda i: (0, 0)),     # weights: same block every step
        pl.BlockSpec((k, tm), lambda i: (0, i)),     # patches: lane-tiled
    ]
    args = [w_mat, patches]
    if has_res:
        in_specs.append(pl.BlockSpec((co, tm), lambda i: (0, i)))
        args.append(residual)

    kernel = functools.partial(
        _conv_gemm_kernel, pre_act=pre_act, post_act=post_act, has_residual=has_res
    )
    return pl.pallas_call(
        kernel,
        out_shape=jax.ShapeDtypeStruct((co, m), patches.dtype),
        grid_spec=pl.GridSpec(
            grid=grid,
            in_specs=in_specs,
            out_specs=pl.BlockSpec((co, tm), lambda i: (0, i)),
        ),
        compiler_params=pltpu.CompilerParams(
            dimension_semantics=("parallel",),
            vmem_limit_bytes=32 * 1024 * 1024,
        ),
    )(*args)


# ---------------------------------------------------------------------------
# Layout helpers (wrapper-side plumbing, tiny tensors)
# ---------------------------------------------------------------------------
def _im2col(x, kh, kw, stride, dilation, pad):
    """x: (N, C, H, W) -> patches (C*kh*kw, N*OH*OW).
    Row index = c*(kh*kw) + ky*kw + kx ; col index = n*(OH*OW) + oy*OW + ox.
    `pad` = ((top, bottom), (left, right))."""
    n, c, h, w = x.shape
    xp = jnp.pad(x, ((0, 0), (0, 0), pad[0], pad[1]))
    hp = h + pad[0][0] + pad[0][1]
    wp = w + pad[1][0] + pad[1][1]
    oh = (hp - dilation * (kh - 1) - 1) // stride + 1
    ow = (wp - dilation * (kw - 1) - 1) // stride + 1
    taps = []
    for ky in range(kh):
        for kx in range(kw):
            y0 = ky * dilation
            x0 = kx * dilation
            taps.append(
                xp[:, :,
                   y0: y0 + (oh - 1) * stride + 1: stride,
                   x0: x0 + (ow - 1) * stride + 1: stride]
            )
    a = jnp.stack(taps, axis=2)                                   # (N, C, kh*kw, OH, OW)
    patches = a.transpose(1, 2, 0, 3, 4).reshape(c * kh * kw, n * oh * ow)
    return patches, oh, ow


def _zero_dilate(x, stride):
    n, c, h, w = x.shape
    out = jnp.zeros((n, c, (h - 1) * stride + 1, (w - 1) * stride + 1), x.dtype)
    return out.at[:, :, ::stride, ::stride].set(x)


def _to_nchw(y_flat, n, oh, ow):
    co = y_flat.shape[0]
    return y_flat.reshape(co, n, oh, ow).transpose(1, 0, 2, 3)


# ---------------------------------------------------------------------------
# UnetSkipConnectionBlock forward (innermost leaf, default config, bias-free convs)
# ---------------------------------------------------------------------------
def unet_skip_connection_block(x, in_pyramid, params):
    n = x.shape[0]
    state = in_pyramid[0]
    x_and_layer = jnp.concatenate([x, state], axis=1)             # (N, in_size, H, W)

    # down: LeakyReLU(0.2) -> Conv2d(k=3, dilation=2, stride=2, pad=2, bias=False)
    p1, oh1, ow1 = _im2col(x_and_layer, 3, 3, stride=2, dilation=2, pad=((2, 2), (2, 2)))
    w1 = params["down_w"].reshape(params["down_w"].shape[0], -1)
    next_x = _to_nchw(conv_gemm(w1, p1, pre_act="leaky_relu"), n, oh1, ow1)

    # up: ReLU -> ConvTranspose2d(k=3, stride=2, pad=1, output_pad=1, bias=False) -> ReLU
    # Transposed conv == zero-dilate input by stride, pad (k-1-p, k-1-p+op) = (1, 2),
    # then stride-1 conv with the spatially-flipped, channel-swapped weight.
    xd = _zero_dilate(next_x, 2)
    p2, oh2, ow2 = _im2col(xd, 3, 3, stride=1, dilation=1, pad=((1, 2), (1, 2)))
    w_up_std = jnp.flip(params["up_w"], axis=(2, 3)).transpose(1, 0, 2, 3)
    w2 = w_up_std.reshape(w_up_std.shape[0], -1)
    up_layer = _to_nchw(conv_gemm(w2, p2, pre_act="relu", post_act="relu"), n, oh2, ow2)

    # out: Conv2d(k=3, stride=1, pad=1, bias=False) on concat  + skip connection (state +)
    cat2 = jnp.concatenate([x_and_layer, up_layer], axis=1)
    p3, oh3, ow3 = _im2col(cat2, 3, 3, stride=1, dilation=1, pad=((1, 1), (1, 1)))
    w3 = params["out_w"].reshape(params["out_w"].shape[0], -1)
    res = state.transpose(1, 0, 2, 3).reshape(state.shape[1], -1)
    next_layer = _to_nchw(conv_gemm(w3, p3, residual=res), n, oh3, ow3)

    return [next_layer]


# ---------------------------------------------------------------------------
# Pure-JAX reference (lax convolutions, full f32 precision)
# ---------------------------------------------------------------------------
def _reference(x, in_pyramid, params):
    dn = ("NCHW", "OIHW", "NCHW")
    hp = lax.Precision.HIGHEST
    state = in_pyramid[0]
    xl = jnp.concatenate([x, state], axis=1)
    h = jnp.where(xl >= 0, xl, 0.2 * xl)
    next_x = lax.conv_general_dilated(h, params["down_w"], (2, 2), ((2, 2), (2, 2)),
                                      rhs_dilation=(2, 2), dimension_numbers=dn,
                                      precision=hp)
    w_up_std = jnp.flip(params["up_w"], axis=(2, 3)).transpose(1, 0, 2, 3)
    up = lax.conv_general_dilated(jnp.maximum(next_x, 0.0), w_up_std, (1, 1),
                                  ((1, 2), (1, 2)), lhs_dilation=(2, 2),
                                  dimension_numbers=dn, precision=hp)
    up_layer = jnp.maximum(up, 0.0)
    cat2 = jnp.concatenate([xl, up_layer], axis=1)
    nl = lax.conv_general_dilated(cat2, params["out_w"], (1, 1), ((1, 1), (1, 1)),
                                  dimension_numbers=dn, precision=hp)
    return state + nl


if __name__ == "__main__":
    key = jax.random.PRNGKey(0)
    k1, k2, k3, k4, k5 = jax.random.split(key, 5)

    # batch=2, input_nc=4, outer_nc=4, inner_nc=8, spatial 16x16
    N, input_nc, outer_nc, inner_nc, H, W = 2, 4, 4, 8, 16, 16
    in_size = input_nc + outer_nc  # use_input and use_pyramid

    x = jax.random.normal(k1, (N, input_nc, H, W), jnp.float32)
    state = jax.random.normal(k2, (N, outer_nc, H, W), jnp.float32)  # in_pyramid[0]
    params = {
        # PyTorch layouts: Conv2d (out, in, kh, kw); ConvTranspose2d (in, out, kh, kw)
        "down_w": 0.1 * jax.random.normal(k3, (inner_nc, in_size, 3, 3), jnp.float32),
        "up_w":   0.1 * jax.random.normal(k4, (inner_nc, outer_nc, 3, 3), jnp.float32),
        "out_w":  0.1 * jax.random.normal(k5, (outer_nc, in_size + outer_nc, 3, 3), jnp.float32),
    }

    out_pyramid = unet_skip_connection_block(x, [state], params)
    out = jax.block_until_ready(out_pyramid[0])

    ref = _reference(x, [state], params)
    assert out.shape == (N, outer_nc, H, W) and out.dtype == jnp.float32
    # Loose-ish tolerance only to allow for possible reduced-precision MXU passes;
    # structural errors would be O(1).
    assert jnp.allclose(out, ref, atol=2e-2, rtol=2e-2), "mismatch vs lax reference"

    print("KERNEL_OK")
</pallas_src>

<mosaic_0001>
module attributes {stable_mosaic.version = 11 : i64} {
  func.func @_conv_gemm_kernel(%arg0: i32, %arg1: memref<8x72xf32, #tpu.memory_space<vmem>>, %arg2: memref<72x128xf32, #tpu.memory_space<vmem>>, %arg3: memref<8x128xf32, #tpu.memory_space<vmem>>) attributes {dimension_semantics = [#tpu.dimension_semantics<parallel>], iteration_bounds = array<i64: 1>, scalar_prefetch = 0 : i64, scratch_operands = 0 : i64, tpu.core_type = #tpu.core_type<tc>, window_params = [{pipeline_mode = #tpu.pipeline_mode<synchronous>, transform_indices = @transform_0, window_bounds = array<i64: 8, 72>}, {transform_indices = @transform_1, window_bounds = array<i64: 72, 128>}, {transform_indices = @transform_2, window_bounds = array<i64: 8, 128>}]} {
    %c0 = arith.constant 0 : index
    %c0_0 = arith.constant 0 : index
    %0 = vector.load %arg2[%c0, %c0_0] : memref<72x128xf32, #tpu.memory_space<vmem>>, vector<72x128xf32>
    %cst = arith.constant 0.000000e+00 : f32
    %1 = vector.broadcast %cst : f32 to vector<72x128xf32>
    %2 = arith.cmpf oge, %0, %1 : vector<72x128xf32>
    %cst_1 = arith.constant 2.000000e-01 : f32
    %3 = vector.broadcast %cst_1 : f32 to vector<72x128xf32>
    %4 = arith.mulf %3, %0 : vector<72x128xf32>
    %5 = arith.select %2, %0, %4 : vector<72x128xi1>, vector<72x128xf32>
    %c0_2 = arith.constant 0 : index
    %c0_3 = arith.constant 0 : index
    %6 = vector.load %arg1[%c0_2, %c0_3] : memref<8x72xf32, #tpu.memory_space<vmem>>, vector<8x72xf32>
    %cst_4 = arith.constant dense<0.000000e+00> : vector<8x128xf32>
    %7 = tpu.matmul %6, %5, %cst_4 {dimension_numbers = #tpu.dot_dimension_numbers<[1], [0], [0], [1], [0, 0, 1, 1], [], []>} : vector<8x72xf32>, vector<72x128xf32>, vector<8x128xf32> -> vector<8x128xf32>
    %c0_5 = arith.constant 0 : index
    %c0_6 = arith.constant 0 : index
    %8 = vector.load %arg3[%c0_5, %c0_6] : memref<8x128xf32, #tpu.memory_space<vmem>>, vector<8x128xf32>
    tpu.vector_store %arg3[%c0_5, %c0_6], %7 {strides = array<i32>} : memref<8x128xf32, #tpu.memory_space<vmem>>, vector<8x128xf32>,
    return
  }
  func.func @transform_0(%arg0: i32) -> (i32, i32) {
    %c0_i32 = arith.constant 0 : i32
    %c0_i32_0 = arith.constant 0 : i32
    %c0_i32_1 = arith.constant 0 : i32
    return %c0_i32, %c0_i32_0 : i32, i32
  }
  func.func @transform_1(%arg0: i32) -> (i32, i32) {
    %c0_i32 = arith.constant 0 : i32
    %c0_i32_0 = arith.constant 0 : i32
    return %c0_i32, %arg0 : i32, i32
  }
  func.func @transform_2(%arg0: i32) -> (i32, i32) {
    %c0_i32 = arith.constant 0 : i32
    %c0_i32_0 = arith.constant 0 : i32
    return %c0_i32, %arg0 : i32, i32
  }
}

</mosaic_0001>

<llo_original>
// kernel: tpu_custom_call.1
$region0: #{tpu_custom_call.1}
  #allocation0 [shape = 'u32[]', space=smem, size = 0x4, offset = 0x4, fixed_abs, tag = 'smem constant byte address 0x4 - core index']
  #allocation1 [shape = 'u32[144,128]{1,0:T(1,128)}', space=vmem, size = 0x12000, scoped, tag = 'internal scratch']
  %s0 = inlined_call_operand.hbm [shape: f32[8,72], index: 0, kind: input, shape index: {}]
  %s1 = inlined_call_operand.hbm [shape: f32[72,128], index: 1, kind: input, shape index: {}]
  %s2 = inlined_call_operand.hbm [shape: f32[8,128], index: 2, kind: output, shape index: {}]
  %s3 = sld [smem:[#allocation0]]
  $region26: #{tpu_custom_call.1} parent=0
    _
  %s5 = ssub.s32 1, %s3
  %s6 = scalar_select 0, %s5, %s3
  $region1: #{tpu_custom_call.1} parent=0
    #allocation2 [shape = 'u8[4096]{0}', space=vmem, size = 0x1000, scoped, tag = 'input window, operand 0, single buffered']
    #allocation3 [shape = 's32[1]{0}', space=sflag, size = 0x4, scoped, tag = 'scoped memory for tpu_custom_call.1']
    #allocation4 [shape = 's32[1]{0}', space=sflag, size = 0x4, scoped, tag = 'scoped memory for tpu_custom_call.1']
    #allocation5 [shape = 'u8[36864]{0}', space=vmem, size = 0x9000, scoped, tag = 'input window, operand 1, single buffered']
    #allocation6 [shape = 's32[1]{0}', space=sflag, size = 0x4, scoped, tag = 'scoped memory for tpu_custom_call.1']
    #allocation7 [shape = 'u8[4096]{0}', space=vmem, size = 0x1000, scoped, tag = 'output window, operand 0, single buffered']
    %7 = vsyncpa [#allocation3], 0
    %8 = vsyncpa [#allocation6], 0
    %9 = vsyncpa [#allocation4], 0
    // Predicated region
    $region2: #{tpu_custom_call.1} parent=1 // pred_check
      _
    $region3: #{tpu_custom_call.1} parent=1 // pred_check_branch
      %11 = sbr.rel (0) target = $region5
    $region4: #{tpu_custom_call.1} parent=1 // pred_region
      %s13 = ssub.s32 128, 128
      %14 = vsyncadd [#allocation3], %s13
      %s16 = sshll.u32 [#allocation2], 4
      %s17 = int_to_ptr.vmem [resolvable:$true] %s16
      %19 = dma.hbm_to_vmem [thread:$0]  %s0, 128, %s17, [#allocation3]
    $region5: #{tpu_custom_call.1} parent=1 // pred_fallthru
      _
    // Predicated region
    $region6: #{tpu_custom_call.1} parent=1 // pred_check
      _
    $region7: #{tpu_custom_call.1} parent=1 // pred_check_branch
      %21 = sbr.rel (0) target = $region9
    $region8: #{tpu_custom_call.1} parent=1 // pred_region
      %s23 = ssub.s32 1152, 1152
      %24 = vsyncadd [#allocation6], %s23
      %s25 = sshll.u32 [#allocation5], 4
      %s26 = int_to_ptr.vmem [resolvable:$true] %s25
      %31 = dma.hbm_to_vmem [thread:$0]  %s1, 1152, %s26, [#allocation6], 128, 128, 8
    $region9: #{tpu_custom_call.1} parent=1 // pred_fallthru
      _
    // Predicated region
    $region10: #{tpu_custom_call.1} parent=1 // pred_check
      _
    $region11: #{tpu_custom_call.1} parent=1 // pred_check_branch
      %33 = sbr.rel (0) target = $region13
    $region12: #{tpu_custom_call.1} parent=1 // pred_region
      %34 = dma.done [#allocation3], 128
    $region13: #{tpu_custom_call.1} parent=1 // pred_fallthru
      _
    // Predicated region
    $region14: #{tpu_custom_call.1} parent=1 // pred_check
      _
    $region15: #{tpu_custom_call.1} parent=1 // pred_check_branch
      %36 = sbr.rel (0) target = $region17
    $region16: #{tpu_custom_call.1} parent=1 // pred_region
      %37 = dma.done [#allocation6], 1152
    $region17: #{tpu_custom_call.1} parent=1 // pred_fallthru
      _
    %v38 = vld [vmem:[#allocation5] sm:$0xff]
    %v39 = vld [vmem:[#allocation5 + $0x8] sm:$0xff]
    %v40 = vld [vmem:[#allocation5 + $0x10] sm:$0xff]
    %v41 = vld [vmem:[#allocation5 + $0x18] sm:$0xff]
    %v42 = vld [vmem:[#allocation5 + $0x20] sm:$0xff]
    %v43 = vld [vmem:[#allocation5 + $0x28] sm:$0xff]
    %v44 = vld [vmem:[#allocation5 + $0x30] sm:$0xff]
    %v45 = vld [vmem:[#allocation5 + $0x38] sm:$0xff]
    %v46 = vld [vmem:[#allocation5 + $0x40] sm:$0xff]
    %vm47 = vcmp.ge.f32.partialorder %v38, 0.0
    %vm48 = vcmp.ge.f32.partialorder %v39, 0.0
    %vm49 = vcmp.ge.f32.partialorder %v40, 0.0
    %vm50 = vcmp.ge.f32.partialorder %v41, 0.0
    %vm51 = vcmp.ge.f32.partialorder %v42, 0.0
    %vm52 = vcmp.ge.f32.partialorder %v43, 0.0
    %vm53 = vcmp.ge.f32.partialorder %v44, 0.0
    %vm54 = vcmp.ge.f32.partialorder %v45, 0.0
    %vm55 = vcmp.ge.f32.partialorder %v46, 0.0
    %v56 = vmul.f32 %v38, 0.2
    %v57 = vmul.f32 %v39, 0.2
    %v58 = vmul.f32 %v40, 0.2
    %v59 = vmul.f32 %v41, 0.2
    %v60 = vmul.f32 %v42, 0.2
    %v61 = vmul.f32 %v43, 0.2
    %v62 = vmul.f32 %v44, 0.2
    %v63 = vmul.f32 %v45, 0.2
    %v64 = vmul.f32 %v46, 0.2
    %v65 = vsel %vm47, %v38, %v56
    %v66 = vsel %vm48, %v39, %v57
    %v67 = vsel %vm49, %v40, %v58
    %v68 = vsel %vm50, %v41, %v59
    %v69 = vsel %vm51, %v42, %v60
    %v70 = vsel %vm52, %v43, %v61
    %v71 = vsel %vm53, %v44, %v62
    %v72 = vsel %vm54, %v45, %v63
    %v73 = vsel %vm55, %v46, %v64
    %v74 = vld [vmem:[#allocation2] sm:$0xff]
    %vm75 = vcmask 588800
    %v77 = vsel %vm75, %v74, 0
    %79 = vmatprep.subr.mxu0 0.0
    %80 = vmatpush1.msra.mxu0 0.0
    %81 = vmatprep.subr.mxu0 0.0
    %82 = vmatpush1.msra.mxu0 0.0
    %83 = vmatprep.subr.mxu0 0.0
    %84 = vmatpush1.msra.mxu0 0.0
    %85 = vmatprep.subr.mxu0 0.0
    %86 = vmatpush1.msra.mxu0 0.0
    %87 = vmatprep.subr.mxu0 0.0
    %88 = vmatpush1.msra.mxu0 0.0
    %89 = vmatprep.subr.mxu0 0.0
    %90 = vmatpush1.msra.mxu0 0.0
    %91 = vmatprep.subr.mxu0 0.0
    %92 = vmatpush1.msra.mxu0 0.0
    %93 = vmatprep.subr.mxu0 0.0
    %94 = vmatpush1.msra.mxu0 %v73
    %95 = vmatprep.subr.mxu0 0.0
    %96 = vmatpush1.msra.mxu0 %v72
    %97 = vmatprep.subr.mxu0 0.0
    %98 = vmatpush1.msra.mxu0 %v71
    %99 = vmatprep.subr.mxu0 0.0
    %100 = vmatpush1.msra.mxu0 %v70
    %101 = vmatprep.subr.mxu0 0.0
    %102 = vmatpush1.msra.mxu0 %v69
    %103 = vmatprep.subr.mxu0 0.0
    %104 = vmatpush1.msra.mxu0 %v68
    %105 = vmatprep.subr.mxu0 0.0
    %106 = vmatpush1.msra.mxu0 %v67
    %107 = vmatprep.subr.mxu0 0.0
    %108 = vmatpush1.msra.mxu0 %v66
    %109 = vmatprep.subr.mxu0 0.0
    %110 = vmatpush1.msra.mxu0 %v65
    %111 = vmatprep.subr.mxu0 0.0
    %112 = vmatpush2.msra.mxu0 0.0
    %113 = vmatprep.subr.mxu0 0.0
    %114 = vmatpush2.msra.mxu0 0.0
    %115 = vmatprep.subr.mxu0 0.0
    %116 = vmatpush2.msra.mxu0 0.0
    %117 = vmatprep.subr.mxu0 0.0
    %118 = vmatpush2.msra.mxu0 0.0
    %119 = vmatprep.subr.mxu0 0.0
    %120 = vmatpush2.msra.mxu0 0.0
    %121 = vmatprep.subr.mxu0 0.0
    %122 = vmatpush2.msra.mxu0 0.0
    %123 = vmatprep.subr.mxu0 0.0
    %124 = vmatpush2.msra.mxu0 0.0
    %125 = vmatprep.subr.mxu0 0.0
    %126 = vmatpush2.msra.mxu0 0.0
    %127 = vmatprep.subr.mxu0 0.0
    %128 = vmatpush2.msra.mxu0 0.0
    %129 = vmatprep.subr.mxu0 0.0
    %130 = vmatpush2.msra.mxu0 0.0
    %131 = vmatprep.subr.mxu0 0.0
    %132 = vmatpush2.msra.mxu0 0.0
    %133 = vmatprep.subr.mxu0 0.0
    %134 = vmatpush2.msra.mxu0 0.0
    %135 = vmatprep.subr.mxu0 0.0
    %136 = vmatpush2.msra.mxu0 0.0
    %137 = vmatprep.subr.mxu0 0.0
    %138 = vmatpush2.msra.mxu0 0.0
    %139 = vmatprep.subr.mxu0 0.0
    %140 = vmatpush2.msra.mxu0 0.0
    %141 = vmatprep.subr.mxu0 0.0
    %142 = vmatpush2.msra.mxu0 0.0
    %143 = vmatprep.mubr.f32.mxu0 0.0
    %144 = vmatmul.mubr.f32.gmra.mxu0 %v77
    %v145 = vpop.f32.mrf.mxu0
    %v146 = vadd.f32 0.0, %v145
    %v147 = vpop.f32.mrf.mxu0
    %148 = vdwg.mxu0
    %149 = vst [vmem:[#allocation7] sm:$0xff] %v146
    // Predicated region
    $region18: #{tpu_custom_call.1} parent=1 // pred_check
      _
    $region19: #{tpu_custom_call.1} parent=1 // pred_check_branch
      %151 = sbr.rel (0) target = $region21
    $region20: #{tpu_custom_call.1} parent=1 // pred_region
      %s153 = ssub.s32 128, 128
      %154 = vsyncadd [#allocation4], %s153
      %s156 = sshll.u32 [#allocation7], 4
      %s157 = int_to_ptr.vmem [resolvable:$true] %s156
      %159 = dma.vmem_to_hbm [thread:$0]  %s157, 128, %s2, [#allocation4]
    $region21: #{tpu_custom_call.1} parent=1 // pred_fallthru
      _
    // Predicated region
    $region22: #{tpu_custom_call.1} parent=1 // pred_check
      _
    $region23: #{tpu_custom_call.1} parent=1 // pred_check_branch
      %161 = sbr.rel (0) target = $region25
    $region24: #{tpu_custom_call.1} parent=1 // pred_region
      %162 = dma.done [#allocation4], 128
    $region25: #{tpu_custom_call.1} parent=1 // pred_fallthru
      _
    %163 = vsyncpa [#allocation3], 1
    %164 = vsyncpa [#allocation6], 1
    %165 = vsyncpa [#allocation4], 1

</llo_original>
